<compile_context>
chip_gen: v6e
topology: v6e:2x2x1
jax: 0.10.0
libtpu: 0.0.40
codegen_flags: <defaults>
</compile_context>

<pallas_src>
import functools

import jax
import jax.numpy as jnp
from jax.experimental import pallas as pl
from jax.experimental.pallas import tpu as pltpu

_LANES = 128


def _pool_kernel(x_ref, o_ref, acc_ref, *, pooling_type, total, lanes):
    """x_ref: (tile_m, tile_r) input block; o_ref: (tile_m, 1) output block;
    acc_ref: (tile_m, lanes) float32 lane-dense accumulator (VMEM scratch)."""
    k = pl.program_id(1)                     # reduction axis = last grid axis
    is_max = pooling_type == "max"

    @pl.when(k == 0)
    def _init():
        if is_max:
            acc_ref[...] = jnp.full_like(acc_ref, -jnp.inf)
        else:
            acc_ref[...] = jnp.zeros_like(acc_ref)

    x = x_ref[...].astype(jnp.float32)       # f32 accumulation for bf16/fp16 inputs
    tile_r = x.shape[-1]
    n_chunks = tile_r // lanes               # static; tile_r is a multiple of `lanes`

    # Hot loop: pure VPU elementwise accumulation into the lane-dense scratch.
    acc = acc_ref[...]
    for c in range(n_chunks):                # unrolled at trace time (static slices)
        chunk = x[:, c * lanes:(c + 1) * lanes]
        acc = jnp.maximum(acc, chunk) if is_max else acc + chunk
    acc_ref[...] = acc

    # Finalize: single cross-lane (XLU) reduce + one store of the output block.
    @pl.when(k == pl.num_programs(1) - 1)
    def _finalize():
        a = acc_ref[...]
        if is_max:
            r = jnp.max(a, axis=-1, keepdims=True)
        else:
            r = jnp.sum(a, axis=-1, keepdims=True)
            if pooling_type in ("mean", "mean_dim"):
                r = r / jnp.float32(total)   # true R, independent of tiling
        o_ref[...] = r.astype(o_ref.dtype)


def _pick_tile(n, quantum, cap):
    """Largest tile <= cap that divides n and is a multiple of `quantum`
    (or the full extent n, which is always a legal block dimension)."""
    if n <= cap:
        return n
    t = (cap // quantum) * quantum
    while t >= quantum:
        if n % t == 0:
            return t
        t -= quantum
    # No aligned divisor <= cap: fall back to full extent (always legal; only
    # hits pathological sizes and may use more VMEM than ideal).
    return n


def pool_polar(x, pooling_type, dim):
    """Pallas-backed PoolPolar.forward: reduce x over axes (dim, dim+1)."""
    nd = x.ndim
    dim = dim % nd
    assert dim + 1 < nd, "PoolPolar reduces dim twice; need dim+1 to exist"

    keep = [i for i in range(nd) if i not in (dim, dim + 1)]
    out_dims = tuple(x.shape[i] for i in keep)

    if dim + 1 == nd - 1:
        # Reduced axes already trailing: pure reshape, no extra HBM traffic.
        xt = x
    else:
        # TODO(synk): fold this permutation into the BlockSpec index_map so the
        # DMA gathers directly instead of materializing a transposed HBM copy.
        xt = jnp.transpose(x, keep + [dim, dim + 1])

    R = x.shape[dim] * x.shape[dim + 1]
    M = 1
    for s in out_dims:
        M *= s
    x2 = xt.reshape(M, R)

    itemsize = jnp.dtype(x.dtype).itemsize
    sub_q = max(8, 32 // itemsize)           # sublane quantum: 8 f32, 16 bf16, 32 int8
    tile_m = _pick_tile(M, sub_q, 256)       # caps VMEM and gives a parallel axis
    tile_r = _pick_tile(R, _LANES, 2048)     # big streaming tile (~85% HBM roofline)
    grid = (M // tile_m, R // tile_r)        # tiny problems collapse to (1, 1)

    lanes = _LANES if tile_r % _LANES == 0 else tile_r

    kernel = functools.partial(
        _pool_kernel, pooling_type=pooling_type, total=float(R), lanes=lanes)

    out = pl.pallas_call(
        kernel,
        out_shape=jax.ShapeDtypeStruct((M, 1), x.dtype),
        grid_spec=pltpu.PrefetchScalarGridSpec(
            num_scalar_prefetch=0,
            grid=grid,
            in_specs=[pl.BlockSpec((tile_m, tile_r), lambda m, k: (m, k))],
            out_specs=pl.BlockSpec((tile_m, 1), lambda m, k: (m, 0)),
            scratch_shapes=[pltpu.VMEM((tile_m, lanes), jnp.float32)],
        ),
        compiler_params=pltpu.CompilerParams(
            # M axis parallel (shards across v7x's 2 TCs), reduction axis last.
            dimension_semantics=("parallel", "arbitrary"),
            vmem_limit_bytes=32 * 1024 * 1024,
        ),
    )(x2)

    return out.reshape(out_dims)


def _reference(x, pooling_type, dim):
    """Pure-JAX reference matching the PyTorch forward exactly."""
    if pooling_type == "mean":
        n = x.shape[dim]
        x = jnp.sum(x, axis=dim)
        n *= x.shape[dim]
        x = jnp.sum(x, axis=dim)
        return x / n
    elif pooling_type == "mean_dim":
        x = jnp.mean(x, axis=dim)
        return jnp.mean(x, axis=dim)
    elif pooling_type == "sum":
        x = jnp.sum(x, axis=dim)
        return jnp.sum(x, axis=dim)
    elif pooling_type == "max":
        x = jnp.max(x, axis=dim)
        return jnp.max(x, axis=dim)
    return x


if __name__ == "__main__":
    key = jax.random.PRNGKey(0)
    B, C, H, W = 2, 4, 16, 16               # NCHW, small demo shape
    dim = 2                                  # pool over (H, W)
    x = jax.random.normal(key, (B, C, H, W), dtype=jnp.float32)

    ok = True
    for pooling_type in ("mean", "mean_dim", "sum", "max"):
        got = jax.block_until_ready(pool_polar(x, pooling_type, dim))
        ref = _reference(x, pooling_type, dim)
        assert got.shape == ref.shape, (pooling_type, got.shape, ref.shape)
        ok &= bool(jnp.allclose(got, ref, atol=1e-5, rtol=1e-5))

    # bf16 input exercises the f32-accumulation path (correctness-concern fix).
    x_bf16 = x.astype(jnp.bfloat16)
    got = jax.block_until_ready(pool_polar(x_bf16, "mean", dim))
    ref = _reference(x_bf16, "mean", dim)
    ok &= bool(jnp.allclose(got.astype(jnp.float32), ref.astype(jnp.float32),
                            atol=2e-2, rtol=2e-2))

    if ok:
        print("KERNEL_OK")
</pallas_src>

<mosaic_0001>
module attributes {stable_mosaic.version = 11 : i64} {
  func.func @_pool_kernel(%arg0: i32, %arg1: i32, %arg2: memref<8x256xf32, #tpu.memory_space<vmem>>, %arg3: memref<8x1xf32, #tpu.memory_space<vmem>>, %arg4: memref<8x128xf32, #tpu.memory_space<vmem>>) attributes {dimension_semantics = [#tpu.dimension_semantics<parallel>, #tpu.dimension_semantics<arbitrary>], iteration_bounds = array<i64: 1, 1>, scalar_prefetch = 0 : i64, scratch_operands = 1 : i64, tpu.core_type = #tpu.core_type<tc>, window_params = [{transform_indices = @transform_0, window_bounds = array<i64: 8, 256>}, {transform_indices = @transform_1, window_bounds = array<i64: 8, 1>}]} {
    %c0_i32 = arith.constant 0 : i32
    %0 = arith.cmpi eq, %arg1, %c0_i32 : i32
    %1 = arith.extui %0 : i1 to i32
    %c0_i32_0 = arith.constant 0 : i32
    %2 = arith.cmpi ne, %1, %c0_i32_0 : i32
    scf.if %2 {
      %cst = arith.constant 0.000000e+00 : f32
      %13 = vector.broadcast %cst : f32 to vector<8x128xf32>
      %c0_8 = arith.constant 0 : index
      %c0_9 = arith.constant 0 : index
      %14 = vector.load %arg4[%c0_8, %c0_9] : memref<8x128xf32, #tpu.memory_space<vmem>>, vector<8x128xf32>
      tpu.vector_store %arg4[%c0_8, %c0_9], %13 {strides = array<i32>} : memref<8x128xf32, #tpu.memory_space<vmem>>, vector<8x128xf32>,
    } else {
    }
    %c0 = arith.constant 0 : index
    %c0_1 = arith.constant 0 : index
    %3 = vector.load %arg2[%c0, %c0_1] : memref<8x256xf32, #tpu.memory_space<vmem>>, vector<8x256xf32>
    %c0_2 = arith.constant 0 : index
    %c0_3 = arith.constant 0 : index
    %4 = vector.load %arg4[%c0_2, %c0_3] : memref<8x128xf32, #tpu.memory_space<vmem>>, vector<8x128xf32>
    %5 = vector.extract_strided_slice %3 {offsets = [0, 0], sizes = [8, 128], strides = [1, 1]} : vector<8x256xf32> to vector<8x128xf32>
    %6 = arith.addf %4, %5 : vector<8x128xf32>
    %7 = vector.extract_strided_slice %3 {offsets = [0, 128], sizes = [8, 128], strides = [1, 1]} : vector<8x256xf32> to vector<8x128xf32>
    %8 = arith.addf %6, %7 : vector<8x128xf32>
    %c0_4 = arith.constant 0 : index
    %c0_5 = arith.constant 0 : index
    %9 = vector.load %arg4[%c0_4, %c0_5] : memref<8x128xf32, #tpu.memory_space<vmem>>, vector<8x128xf32>
    tpu.vector_store %arg4[%c0_4, %c0_5], %8 {strides = array<i32>} : memref<8x128xf32, #tpu.memory_space<vmem>>, vector<8x128xf32>,
    %c0_i32_6 = arith.constant 0 : i32
    %10 = arith.cmpi eq, %arg1, %c0_i32_6 : i32
    %11 = arith.extui %10 : i1 to i32
    %c0_i32_7 = arith.constant 0 : i32
    %12 = arith.cmpi ne, %11, %c0_i32_7 : i32
    scf.if %12 {
      %c0_8 = arith.constant 0 : index
      %c0_9 = arith.constant 0 : index
      %13 = vector.load %arg4[%c0_8, %c0_9] : memref<8x128xf32, #tpu.memory_space<vmem>>, vector<8x128xf32>
      %cst = arith.constant dense<0.000000e+00> : vector<8xf32>
      %14 = vector.multi_reduction <add>, %13, %cst [1] : vector<8x128xf32> to vector<8xf32>
      %15 = vector.shape_cast %14 : vector<8xf32> to vector<8x1xf32>
      %cst_10 = arith.constant 2.560000e+02 : f32
      %16 = vector.broadcast %cst_10 : f32 to vector<8x1xf32>
      %17 = arith.divf %15, %16 : vector<8x1xf32>
      %c0_11 = arith.constant 0 : index
      %c0_12 = arith.constant 0 : index
      %18 = vector.load %arg3[%c0_11, %c0_12] : memref<8x1xf32, #tpu.memory_space<vmem>>, vector<8x1xf32>
      tpu.vector_store %arg3[%c0_11, %c0_12], %17 {strides = array<i32>} : memref<8x1xf32, #tpu.memory_space<vmem>>, vector<8x1xf32>,
    } else {
    }
    return
  }
  func.func @transform_0(%arg0: i32, %arg1: i32) -> (i32, i32) {
    %c0_i32 = arith.constant 0 : i32
    return %arg0, %arg1 : i32, i32
  }
  func.func @transform_1(%arg0: i32, %arg1: i32) -> (i32, i32) {
    %c0_i32 = arith.constant 0 : i32
    %c0_i32_0 = arith.constant 0 : i32
    return %arg0, %c0_i32 : i32, i32
  }
}

</mosaic_0001>

<llo_original>
// kernel: tpu_custom_call.1
$region0: #{tpu_custom_call.1}
  #allocation0 [shape = 'u32[]', space=smem, size = 0x4, offset = 0x4, fixed_abs, tag = 'smem constant byte address 0x4 - core index']
  #allocation1 [shape = 'u32[144,128]{1,0:T(1,128)}', space=vmem, size = 0x12000, scoped, tag = 'internal scratch']
  #allocation2 [shape = 'f32[8,128]{1,0:T(8,128)}', space=vmem, size = 0x1000, scoped, tag = 'scratch operand']
  %s0 = inlined_call_operand.hbm [shape: f32[8,256], index: 0, kind: input, shape index: {}]
  %s1 = inlined_call_operand.vmem [shape: f32[8,1], index: 1, kind: output, shape index: {}]
  %s2 = sld [smem:[#allocation0]]
  $region26: #{tpu_custom_call.1} parent=0
    _
  %s4 = ssub.s32 1, %s2
  %s5 = scalar_select 0, %s4, %s2
  $region1: #{tpu_custom_call.1} parent=0
    #allocation3 [shape = 'u8[8192]{0}', space=vmem, size = 0x2000, scoped, tag = 'input window, operand 0, single buffered']
    #allocation4 [shape = 's32[1]{0}', space=sflag, size = 0x4, scoped, tag = 'scoped memory for tpu_custom_call.1']
    %6 = vsyncpa [#allocation4], 0
    // Predicated region
    $region2: #{tpu_custom_call.1} parent=1 // pred_check
      _
    $region3: #{tpu_custom_call.1} parent=1 // pred_check_branch
      %8 = sbr.rel (0) target = $region5
    $region4: #{tpu_custom_call.1} parent=1 // pred_region
      %s10 = ssub.s32 256, 256
      %11 = vsyncadd [#allocation4], %s10
      %s13 = sshll.u32 [#allocation3], 4
      %s14 = int_to_ptr.vmem [resolvable:$true] %s13
      %16 = dma.hbm_to_vmem [thread:$0]  %s0, 256, %s14, [#allocation4]
    $region5: #{tpu_custom_call.1} parent=1 // pred_fallthru
      _
    // Predicated region
    $region6: #{tpu_custom_call.1} parent=1 // pred_check
      _
    $region7: #{tpu_custom_call.1} parent=1 // pred_check_branch
      %18 = sbr.rel (0) target = $region9
    $region8: #{tpu_custom_call.1} parent=1 // pred_region
      %19 = dma.done [#allocation4], 256
    $region9: #{tpu_custom_call.1} parent=1 // pred_fallthru
      _
    %p20 = scmp.eq.s32.totalorder 0, 0
    // Predicated region
    $region10: #{tpu_custom_call.1} parent=1 // pred_check
      %p21 = pneg %p20
    $region11: #{tpu_custom_call.1} parent=1 // pred_check_branch
      %23 = sbr.rel (%p21) target = $region13
    $region12: #{tpu_custom_call.1} parent=1 // pred_region
      %24 = vst [vmem:[#allocation2] sm:$0xff] 0.0
    $region13: #{tpu_custom_call.1} parent=1 // pred_fallthru
      _
    %v25 = vld [vmem:[#allocation3] sm:$0xff]
    %v26 = vld [vmem:[#allocation3 + $0x8] sm:$0xff]
    %v27 = vld [vmem:[#allocation2] sm:$0xff]
    %v28 = vadd.f32 %v27, %v25
    %v29 = vadd.f32 %v28, %v26
    %30 = vst [vmem:[#allocation2] sm:$0xff] %v29
    // Predicated region
    $region14: #{tpu_custom_call.1} parent=1 // pred_check
      %p31 = pneg %p20
    $region15: #{tpu_custom_call.1} parent=1 // pred_check_branch
      %33 = sbr.rel (%p31) target = $region17
    $region16: #{tpu_custom_call.1} parent=1 // pred_region
      %v34 = vld [vmem:[#allocation2] sm:$0xff]
      %35 = vadd.xlane.f32.xlu0 %v34
      %v36 = vpop.xlane.xlu0 %35
      %v37 = vrcp.pop 256.0
      %v38 = vmul.f32 %v36, %v37
      %vm39 = vcmask 7168
      %40 = vst.msk [vmem:[%s1] sm:$0xff] %vm39, %v38
    $region17: #{tpu_custom_call.1} parent=1 // pred_fallthru
      _
    // Predicated region
    $region18: #{tpu_custom_call.1} parent=1 // pred_check
      _
    $region19: #{tpu_custom_call.1} parent=1 // pred_check_branch
      %42 = sbr.rel (0) target = $region21
    $region20: #{tpu_custom_call.1} parent=1 // pred_region
      _
    $region21: #{tpu_custom_call.1} parent=1 // pred_fallthru
      _
    // Predicated region
    $region22: #{tpu_custom_call.1} parent=1 // pred_check
      _
    $region23: #{tpu_custom_call.1} parent=1 // pred_check_branch
      %44 = sbr.rel (0) target = $region25
    $region24: #{tpu_custom_call.1} parent=1 // pred_region
      _
    $region25: #{tpu_custom_call.1} parent=1 // pred_fallthru
      _
    %45 = vsyncpa [#allocation4], 1

</llo_original>
